<compile_context>
chip_gen: v7x
topology: tpu7x:2x2x1
jax: 0.10.0
libtpu: 0.0.40
codegen_flags: <defaults>
</compile_context>

<pallas_src>
import jax
import jax.numpy as jnp
from jax.experimental import pallas as pl
from jax.experimental.pallas import tpu as pltpu

# diabetes.csv has 8 feature columns (last column is the label) -> l1 in = 8.
IN_FEATURES = 8
OUT_FEATURES = 2
LAYER_SIZES = [IN_FEATURES, 512, 256, 128, 64, OUT_FEATURES]
OUT_PAD = 128        # final-layer weight zero-padded 2 -> 128 cols (lane-dense MXU result)
MAX_TILE_B = 1024    # max batch rows per grid step


def _round_up(n, m):
    return ((n + m - 1) // m) * m


def _cdiv(a, b):
    return -(-a // b)


def _choose_tiling(batch):
    """Return (tile_b, padded_batch) for a given (static) batch size."""
    if batch <= MAX_TILE_B:
        # Single tile: only pad up to the f32 sublane granule (8 rows).
        tile = _round_up(max(batch, 8), 8)
        return tile, tile
    # Multi-tile: even number of steps (v7x megacore balance), tiles <= ~1024
    # rows and a multiple of 128 (lane dim of the transposed output block).
    steps = 2 * _cdiv(batch, 2 * MAX_TILE_B)
    tile = _round_up(_cdiv(batch, steps), 128)
    return tile, tile * steps


def mlp_kernel(x_ref,
               w1_ref, b1_ref,
               w2_ref, b2_ref,
               w3_ref, b3_ref,
               w4_ref, b4_ref,
               w5_ref, b5_ref,
               o_ref):
    """relu(l1..l4) + linear l5 for one (TILE_B, 8) batch tile, all in VMEM."""
    x = x_ref[...]  # f32 activations; downcast to bf16 only at each MXU input.

    h = jnp.dot(x.astype(jnp.bfloat16), w1_ref[...],
                preferred_element_type=jnp.float32) + b1_ref[...]
    h = jnp.maximum(h, 0.0)

    h = jnp.dot(h.astype(jnp.bfloat16), w2_ref[...],
                preferred_element_type=jnp.float32) + b2_ref[...]
    h = jnp.maximum(h, 0.0)

    h = jnp.dot(h.astype(jnp.bfloat16), w3_ref[...],
                preferred_element_type=jnp.float32) + b3_ref[...]
    h = jnp.maximum(h, 0.0)

    h = jnp.dot(h.astype(jnp.bfloat16), w4_ref[...],
                preferred_element_type=jnp.float32) + b4_ref[...]
    h = jnp.maximum(h, 0.0)

    out = jnp.dot(h.astype(jnp.bfloat16), w5_ref[...],
                  preferred_element_type=jnp.float32) + b5_ref[...]
    # (TILE_B, 128) -> (128, TILE_B) on the XLU, keep the 2 real logit rows:
    # lane-dense (2, TILE_B) store, 8 B/row of HBM writeback.
    o_ref[...] = out.T[:OUT_FEATURES, :].astype(o_ref.dtype)


@jax.jit
def net_forward(x, params):
    """x: (batch, 8) f32. params: list of (W bf16 (in,out), b f32 (1,out_pad))."""
    batch = x.shape[0]
    tile_b, padded_batch = _choose_tiling(batch)
    if padded_batch != batch:
        # Only when the batch isn't already tile-aligned (tiny: 32 B/row of x).
        x = jnp.pad(x, ((0, padded_batch - batch), (0, 0)))

    flat_params = []
    for w, b in params:
        flat_params.append(w)
        flat_params.append(b)

    grid = (padded_batch // tile_b,)

    # x: one batch tile per grid step. Weights/biases: constant block index ->
    # DMA'd once, resident in VMEM across all grid steps.
    in_specs = [pl.BlockSpec((tile_b, IN_FEATURES), lambda i: (i, 0))]
    for p in flat_params:
        in_specs.append(pl.BlockSpec(p.shape, lambda i: (0, 0)))

    out_t = pl.pallas_call(
        mlp_kernel,
        out_shape=jax.ShapeDtypeStruct((OUT_FEATURES, padded_batch), jnp.float32),
        grid=grid,
        in_specs=in_specs,
        out_specs=pl.BlockSpec((OUT_FEATURES, tile_b), lambda i: (0, i)),
        compiler_params=pltpu.CompilerParams(
            dimension_semantics=("parallel",)),   # megacore sharding on v7x
    )(x, *flat_params)

    # (2, padded_batch) -> (batch, 2); touches only 8 B/row.
    return out_t[:, :batch].T


def init_params(key):
    """PyTorch-Linear-style init: U(-1/sqrt(fan_in), 1/sqrt(fan_in)).

    Weights stored (in, out) in bf16 (halves weight DMA, full-rate MXU on
    v6e/v7x); biases kept in f32. The last layer is zero-padded 2 -> 128
    output columns so the kernel's final MXU result is lane-dense.
    """
    params = []
    for i in range(len(LAYER_SIZES) - 1):
        fan_in, fan_out = LAYER_SIZES[i], LAYER_SIZES[i + 1]
        key, kw, kb = jax.random.split(key, 3)
        bound = 1.0 / (fan_in ** 0.5)
        w = jax.random.uniform(kw, (fan_in, fan_out), jnp.float32, -bound, bound)
        b = jax.random.uniform(kb, (1, fan_out), jnp.float32, -bound, bound)
        if i == len(LAYER_SIZES) - 2:   # pad final layer 2 -> 128 cols with zeros
            w = jnp.pad(w, ((0, 0), (0, OUT_PAD - fan_out)))
            b = jnp.pad(b, ((0, 0), (0, OUT_PAD - fan_out)))
        params.append((w.astype(jnp.bfloat16), b))
    return params


def reference_forward(x, params):
    """Pure-JAX reference with identical numerics (bf16 MXU inputs, f32 accum)."""
    h = x
    for i, (w, b) in enumerate(params):
        h = jnp.dot(h.astype(jnp.bfloat16), w,
                    preferred_element_type=jnp.float32) + b
        if i < len(params) - 1:
            h = jnp.maximum(h, 0.0)
    return h[:, :OUT_FEATURES]


if __name__ == "__main__":
    key = jax.random.PRNGKey(0)
    key, kp = jax.random.split(key)
    params = init_params(kp)

    # batch=8:   DataLoader-sized call, single 8-row tile (no padding waste).
    # batch=600: single non-128-multiple tile (608 rows), grid=(1,).
    # batch=2500: multi-tile path (even grid, 128-multiple tiles, batch padding).
    for batch in (8, 600, 2500):
        key, kx = jax.random.split(key)
        xb = jax.random.normal(kx, (batch, IN_FEATURES), jnp.float32)
        out = jax.block_until_ready(net_forward(xb, params))
        ref = reference_forward(xb, params)
        assert out.shape == (batch, OUT_FEATURES), (batch, out.shape)
        assert jnp.allclose(out, ref, atol=2e-3, rtol=2e-3), \
            f"mismatch vs reference (batch={batch})"

    print("KERNEL_OK")
</pallas_src>

<mosaic_0001>
module attributes {stable_mosaic.version = 11 : i64} {
  func.func @mlp_kernel(%arg0: i32, %arg1: memref<8x8xf32, #tpu.memory_space<vmem>>, %arg2: memref<8x512xbf16, #tpu.memory_space<vmem>>, %arg3: memref<1x512xf32, #tpu.memory_space<vmem>>, %arg4: memref<512x256xbf16, #tpu.memory_space<vmem>>, %arg5: memref<1x256xf32, #tpu.memory_space<vmem>>, %arg6: memref<256x128xbf16, #tpu.memory_space<vmem>>, %arg7: memref<1x128xf32, #tpu.memory_space<vmem>>, %arg8: memref<128x64xbf16, #tpu.memory_space<vmem>>, %arg9: memref<1x64xf32, #tpu.memory_space<vmem>>, %arg10: memref<64x128xbf16, #tpu.memory_space<vmem>>, %arg11: memref<1x128xf32, #tpu.memory_space<vmem>>, %arg12: memref<2x8xf32, #tpu.memory_space<vmem>>) attributes {dimension_semantics = [#tpu.dimension_semantics<parallel>], iteration_bounds = array<i64: 1>, scalar_prefetch = 0 : i64, scratch_operands = 0 : i64, tpu.core_type = #tpu.core_type<tc>, window_params = [{transform_indices = @transform_0, window_bounds = array<i64: 8, 8>}, {pipeline_mode = #tpu.pipeline_mode<synchronous>, transform_indices = @transform_1, window_bounds = array<i64: 8, 512>}, {pipeline_mode = #tpu.pipeline_mode<synchronous>, transform_indices = @transform_2, window_bounds = array<i64: 1, 512>}, {pipeline_mode = #tpu.pipeline_mode<synchronous>, transform_indices = @transform_3, window_bounds = array<i64: 512, 256>}, {pipeline_mode = #tpu.pipeline_mode<synchronous>, transform_indices = @transform_4, window_bounds = array<i64: 1, 256>}, {pipeline_mode = #tpu.pipeline_mode<synchronous>, transform_indices = @transform_5, window_bounds = array<i64: 256, 128>}, {pipeline_mode = #tpu.pipeline_mode<synchronous>, transform_indices = @transform_6, window_bounds = array<i64: 1, 128>}, {pipeline_mode = #tpu.pipeline_mode<synchronous>, transform_indices = @transform_7, window_bounds = array<i64: 128, 64>}, {pipeline_mode = #tpu.pipeline_mode<synchronous>, transform_indices = @transform_8, window_bounds = array<i64: 1, 64>}, {pipeline_mode = #tpu.pipeline_mode<synchronous>, transform_indices = @transform_9, window_bounds = array<i64: 64, 128>}, {pipeline_mode = #tpu.pipeline_mode<synchronous>, transform_indices = @transform_10, window_bounds = array<i64: 1, 128>}, {transform_indices = @transform_11, window_bounds = array<i64: 2, 8>}]} {
    %c0 = arith.constant 0 : index
    %c0_0 = arith.constant 0 : index
    %0 = vector.load %arg1[%c0, %c0_0] : memref<8x8xf32, #tpu.memory_space<vmem>>, vector<8x8xf32>
    %1 = arith.truncf %0 : vector<8x8xf32> to vector<8x8xbf16>
    %c0_1 = arith.constant 0 : index
    %c0_2 = arith.constant 0 : index
    %2 = vector.load %arg2[%c0_1, %c0_2] : memref<8x512xbf16, #tpu.memory_space<vmem>>, vector<8x512xbf16>
    %cst = arith.constant dense<0.000000e+00> : vector<8x512xf32>
    %3 = tpu.matmul %1, %2, %cst {dimension_numbers = #tpu.dot_dimension_numbers<[1], [0], [0], [1], [0, 0, 1, 1], [], []>} : vector<8x8xbf16>, vector<8x512xbf16>, vector<8x512xf32> -> vector<8x512xf32>
    %c0_3 = arith.constant 0 : index
    %c0_4 = arith.constant 0 : index
    %4 = vector.load %arg3[%c0_3, %c0_4] : memref<1x512xf32, #tpu.memory_space<vmem>>, vector<1x512xf32>
    %5 = vector.broadcast %4 : vector<1x512xf32> to vector<8x512xf32>
    %6 = arith.addf %3, %5 : vector<8x512xf32>
    %cst_5 = arith.constant 0.000000e+00 : f32
    %7 = vector.broadcast %cst_5 : f32 to vector<8x512xf32>
    %8 = arith.maximumf %6, %7 : vector<8x512xf32>
    %9 = arith.truncf %8 : vector<8x512xf32> to vector<8x512xbf16>
    %c0_6 = arith.constant 0 : index
    %c0_7 = arith.constant 0 : index
    %10 = vector.load %arg4[%c0_6, %c0_7] : memref<512x256xbf16, #tpu.memory_space<vmem>>, vector<512x256xbf16>
    %cst_8 = arith.constant dense<0.000000e+00> : vector<8x256xf32>
    %11 = tpu.matmul %9, %10, %cst_8 {dimension_numbers = #tpu.dot_dimension_numbers<[1], [0], [0], [1], [0, 0, 1, 1], [], []>} : vector<8x512xbf16>, vector<512x256xbf16>, vector<8x256xf32> -> vector<8x256xf32>
    %c0_9 = arith.constant 0 : index
    %c0_10 = arith.constant 0 : index
    %12 = vector.load %arg5[%c0_9, %c0_10] : memref<1x256xf32, #tpu.memory_space<vmem>>, vector<1x256xf32>
    %13 = vector.broadcast %12 : vector<1x256xf32> to vector<8x256xf32>
    %14 = arith.addf %11, %13 : vector<8x256xf32>
    %cst_11 = arith.constant 0.000000e+00 : f32
    %15 = vector.broadcast %cst_11 : f32 to vector<8x256xf32>
    %16 = arith.maximumf %14, %15 : vector<8x256xf32>
    %17 = arith.truncf %16 : vector<8x256xf32> to vector<8x256xbf16>
    %c0_12 = arith.constant 0 : index
    %c0_13 = arith.constant 0 : index
    %18 = vector.load %arg6[%c0_12, %c0_13] : memref<256x128xbf16, #tpu.memory_space<vmem>>, vector<256x128xbf16>
    %cst_14 = arith.constant dense<0.000000e+00> : vector<8x128xf32>
    %19 = tpu.matmul %17, %18, %cst_14 {dimension_numbers = #tpu.dot_dimension_numbers<[1], [0], [0], [1], [0, 0, 1, 1], [], []>} : vector<8x256xbf16>, vector<256x128xbf16>, vector<8x128xf32> -> vector<8x128xf32>
    %c0_15 = arith.constant 0 : index
    %c0_16 = arith.constant 0 : index
    %20 = vector.load %arg7[%c0_15, %c0_16] : memref<1x128xf32, #tpu.memory_space<vmem>>, vector<1x128xf32>
    %21 = vector.broadcast %20 : vector<1x128xf32> to vector<8x128xf32>
    %22 = arith.addf %19, %21 : vector<8x128xf32>
    %cst_17 = arith.constant 0.000000e+00 : f32
    %23 = vector.broadcast %cst_17 : f32 to vector<8x128xf32>
    %24 = arith.maximumf %22, %23 : vector<8x128xf32>
    %25 = arith.truncf %24 : vector<8x128xf32> to vector<8x128xbf16>
    %c0_18 = arith.constant 0 : index
    %c0_19 = arith.constant 0 : index
    %26 = vector.load %arg8[%c0_18, %c0_19] : memref<128x64xbf16, #tpu.memory_space<vmem>>, vector<128x64xbf16>
    %cst_20 = arith.constant dense<0.000000e+00> : vector<8x64xf32>
    %27 = tpu.matmul %25, %26, %cst_20 {dimension_numbers = #tpu.dot_dimension_numbers<[1], [0], [0], [1], [0, 0, 1, 1], [], []>} : vector<8x128xbf16>, vector<128x64xbf16>, vector<8x64xf32> -> vector<8x64xf32>
    %c0_21 = arith.constant 0 : index
    %c0_22 = arith.constant 0 : index
    %28 = vector.load %arg9[%c0_21, %c0_22] : memref<1x64xf32, #tpu.memory_space<vmem>>, vector<1x64xf32>
    %29 = vector.broadcast %28 : vector<1x64xf32> to vector<8x64xf32>
    %30 = arith.addf %27, %29 : vector<8x64xf32>
    %cst_23 = arith.constant 0.000000e+00 : f32
    %31 = vector.broadcast %cst_23 : f32 to vector<8x64xf32>
    %32 = arith.maximumf %30, %31 : vector<8x64xf32>
    %33 = arith.truncf %32 : vector<8x64xf32> to vector<8x64xbf16>
    %c0_24 = arith.constant 0 : index
    %c0_25 = arith.constant 0 : index
    %34 = vector.load %arg10[%c0_24, %c0_25] : memref<64x128xbf16, #tpu.memory_space<vmem>>, vector<64x128xbf16>
    %cst_26 = arith.constant dense<0.000000e+00> : vector<8x128xf32>
    %35 = tpu.matmul %33, %34, %cst_26 {dimension_numbers = #tpu.dot_dimension_numbers<[1], [0], [0], [1], [0, 0, 1, 1], [], []>} : vector<8x64xbf16>, vector<64x128xbf16>, vector<8x128xf32> -> vector<8x128xf32>
    %c0_27 = arith.constant 0 : index
    %c0_28 = arith.constant 0 : index
    %36 = vector.load %arg11[%c0_27, %c0_28] : memref<1x128xf32, #tpu.memory_space<vmem>>, vector<1x128xf32>
    %37 = vector.broadcast %36 : vector<1x128xf32> to vector<8x128xf32>
    %38 = arith.addf %35, %37 : vector<8x128xf32>
    %39 = tpu.transpose %38, [1, 0] : vector<8x128xf32> -> vector<128x8xf32>
    %40 = vector.extract_strided_slice %39 {offsets = [0, 0], sizes = [2, 8], strides = [1, 1]} : vector<128x8xf32> to vector<2x8xf32>
    %c0_29 = arith.constant 0 : index
    %c0_30 = arith.constant 0 : index
    %41 = vector.load %arg12[%c0_29, %c0_30] : memref<2x8xf32, #tpu.memory_space<vmem>>, vector<2x8xf32>
    tpu.vector_store %arg12[%c0_29, %c0_30], %40 {strides = array<i32>} : memref<2x8xf32, #tpu.memory_space<vmem>>, vector<2x8xf32>,
    return
  }
  func.func @transform_0(%arg0: i32) -> (i32, i32) {
    %c0_i32 = arith.constant 0 : i32
    %c0_i32_0 = arith.constant 0 : i32
    return %arg0, %c0_i32 : i32, i32
  }
  func.func @transform_1(%arg0: i32) -> (i32, i32) {
    %c0_i32 = arith.constant 0 : i32
    %c0_i32_0 = arith.constant 0 : i32
    %c0_i32_1 = arith.constant 0 : i32
    return %c0_i32, %c0_i32_0 : i32, i32
  }
  func.func @transform_2(%arg0: i32) -> (i32, i32) {
    %c0_i32 = arith.constant 0 : i32
    %c0_i32_0 = arith.constant 0 : i32
    %c0_i32_1 = arith.constant 0 : i32
    return %c0_i32, %c0_i32_0 : i32, i32
  }
  func.func @transform_3(%arg0: i32) -> (i32, i32) {
    %c0_i32 = arith.constant 0 : i32
    %c0_i32_0 = arith.constant 0 : i32
    %c0_i32_1 = arith.constant 0 : i32
    return %c0_i32, %c0_i32_0 : i32, i32
  }
  func.func @transform_4(%arg0: i32) -> (i32, i32) {
    %c0_i32 = arith.constant 0 : i32
    %c0_i32_0 = arith.constant 0 : i32
    %c0_i32_1 = arith.constant 0 : i32
    return %c0_i32, %c0_i32_0 : i32, i32
  }
  func.func @transform_5(%arg0: i32) -> (i32, i32) {
    %c0_i32 = arith.constant 0 : i32
    %c0_i32_0 = arith.constant 0 : i32
    %c0_i32_1 = arith.constant 0 : i32
    return %c0_i32, %c0_i32_0 : i32, i32
  }
  func.func @transform_6(%arg0: i32) -> (i32, i32) {
    %c0_i32 = arith.constant 0 : i32
    %c0_i32_0 = arith.constant 0 : i32
    %c0_i32_1 = arith.constant 0 : i32
    return %c0_i32, %c0_i32_0 : i32, i32
  }
  func.func @transform_7(%arg0: i32) -> (i32, i32) {
    %c0_i32 = arith.constant 0 : i32
    %c0_i32_0 = arith.constant 0 : i32
    %c0_i32_1 = arith.constant 0 : i32
    return %c0_i32, %c0_i32_0 : i32, i32
  }
  func.func @transform_8(%arg0: i32) -> (i32, i32) {
    %c0_i32 = arith.constant 0 : i32
    %c0_i32_0 = arith.constant 0 : i32
    %c0_i32_1 = arith.constant 0 : i32
    return %c0_i32, %c0_i32_0 : i32, i32
  }
  func.func @transform_9(%arg0: i32) -> (i32, i32) {
    %c0_i32 = arith.constant 0 : i32
    %c0_i32_0 = arith.constant 0 : i32
    %c0_i32_1 = arith.constant 0 : i32
    return %c0_i32, %c0_i32_0 : i32, i32
  }
  func.func @transform_10(%arg0: i32) -> (i32, i32) {
    %c0_i32 = arith.constant 0 : i32
    %c0_i32_0 = arith.constant 0 : i32
    %c0_i32_1 = arith.constant 0 : i32
    return %c0_i32, %c0_i32_0 : i32, i32
  }
  func.func @transform_11(%arg0: i32) -> (i32, i32) {
    %c0_i32 = arith.constant 0 : i32
    %c0_i32_0 = arith.constant 0 : i32
    return %c0_i32, %arg0 : i32, i32
  }
}

</mosaic_0001>

<llo_original>
// kernel: net_forward.1
$region0: #{net_forward.1}
  #allocation0 [shape = 'u32[]', space=smem, size = 0x4, offset = 0x4, fixed_abs, tag = 'smem constant byte address 0x4 - core index']
  #allocation1 [shape = 'u32[144,128]{1,0:T(1,128)}', space=vmem, size = 0x12000, scoped, tag = 'internal scratch']
  %s0 = inlined_call_operand.vmem [shape: f32[8,8], index: 0, kind: input, shape index: {}]
  %s1 = inlined_call_operand.vmem [shape: bf16[8,512], index: 1, kind: input, shape index: {}]
  %s2 = inlined_call_operand.vmem [shape: f32[1,512], index: 2, kind: input, shape index: {}]
  %s3 = inlined_call_operand.hbm [shape: bf16[512,256], index: 3, kind: input, shape index: {}]
  %s4 = inlined_call_operand.vmem [shape: f32[1,256], index: 4, kind: input, shape index: {}]
  %s5 = inlined_call_operand.hbm [shape: bf16[256,128], index: 5, kind: input, shape index: {}]
  %s6 = inlined_call_operand.vmem [shape: f32[1,128], index: 6, kind: input, shape index: {}]
  %s7 = inlined_call_operand.vmem [shape: bf16[128,64], index: 7, kind: input, shape index: {}]
  %s8 = inlined_call_operand.vmem [shape: f32[1,64], index: 8, kind: input, shape index: {}]
  %s9 = inlined_call_operand.vmem [shape: bf16[64,128], index: 9, kind: input, shape index: {}]
  %s10 = inlined_call_operand.vmem [shape: f32[1,128], index: 10, kind: input, shape index: {}]
  %s11 = inlined_call_operand.hbm [shape: f32[2,8], index: 11, kind: output, shape index: {}]
  %s12 = sld [smem:[#allocation0]]
  $region62: #{net_forward.1} parent=0
    _
  %s14 = ssub.s32 1, %s12
  %s15 = scalar_select 0, %s14, %s12
  $region1: #{net_forward.1} parent=0
    #allocation2 [shape = 'u8[262144]{0}', space=vmem, size = 0x40000, scoped, tag = 'input window, operand 3, single buffered']
    #allocation3 [shape = 's32[1]{0}', space=sflag, size = 0x4, scoped, tag = 'scoped memory for net_forward.1']
    #allocation4 [shape = 's32[1]{0}', space=sflag, size = 0x4, scoped, tag = 'scoped memory for net_forward.1']
    #allocation5 [shape = 'u8[65536]{0}', space=vmem, size = 0x10000, scoped, tag = 'input window, operand 5, single buffered']
    #allocation6 [shape = 's32[1]{0}', space=sflag, size = 0x4, scoped, tag = 'scoped memory for net_forward.1']
    #allocation7 [shape = 'u8[1024]{0}', space=vmem, size = 0x400, scoped, tag = 'output window, operand 0, single buffered']
    %16 = vsyncpa [#allocation3], 0
    %17 = vsyncpa [#allocation6], 0
    %18 = vsyncpa [#allocation4], 0
    // Predicated region
    $region2: #{net_forward.1} parent=1 // pred_check
      _
    $region3: #{net_forward.1} parent=1 // pred_check_branch
      %20 = sbr.rel (0) target = $region5
    $region4: #{net_forward.1} parent=1 // pred_region
      _
    $region5: #{net_forward.1} parent=1 // pred_fallthru
      _
    // Predicated region
    $region6: #{net_forward.1} parent=1 // pred_check
      _
    $region7: #{net_forward.1} parent=1 // pred_check_branch
      %22 = sbr.rel (0) target = $region9
    $region8: #{net_forward.1} parent=1 // pred_region
      _
    $region9: #{net_forward.1} parent=1 // pred_fallthru
      _
    // Predicated region
    $region10: #{net_forward.1} parent=1 // pred_check
      _
    $region11: #{net_forward.1} parent=1 // pred_check_branch
      %24 = sbr.rel (0) target = $region13
    $region12: #{net_forward.1} parent=1 // pred_region
      _
    $region13: #{net_forward.1} parent=1 // pred_fallthru
      _
    // Predicated region
    $region14: #{net_forward.1} parent=1 // pred_check
      _
    $region15: #{net_forward.1} parent=1 // pred_check_branch
      %26 = sbr.rel (0) target = $region17
    $region16: #{net_forward.1} parent=1 // pred_region
      %s28 = ssub.s32 8192, 8192
      %29 = vsyncadd [#allocation3], %s28
      %s30 = sshll.u32 [#allocation2], 4
      %s31 = int_to_ptr.vmem [resolvable:$true] %s30
      %36 = dma.hbm_to_vmem [thread:$0]  %s3, 8192, %s31, [#allocation3], 128, 128, 8
    $region17: #{net_forward.1} parent=1 // pred_fallthru
      _
    // Predicated region
    $region18: #{net_forward.1} parent=1 // pred_check
      _
    $region19: #{net_forward.1} parent=1 // pred_check_branch
      %38 = sbr.rel (0) target = $region21
    $region20: #{net_forward.1} parent=1 // pred_region
      _
    $region21: #{net_forward.1} parent=1 // pred_fallthru
      _
    // Predicated region
    $region22: #{net_forward.1} parent=1 // pred_check
      _
    $region23: #{net_forward.1} parent=1 // pred_check_branch
      %40 = sbr.rel (0) target = $region25
    $region24: #{net_forward.1} parent=1 // pred_region
      %s42 = ssub.s32 2048, 2048
      %43 = vsyncadd [#allocation6], %s42
      %s44 = sshll.u32 [#allocation5], 4
      %s45 = int_to_ptr.vmem [resolvable:$true] %s44
      %50 = dma.hbm_to_vmem [thread:$0]  %s5, 2048, %s45, [#allocation6], 64, 64, 4
    $region25: #{net_forward.1} parent=1 // pred_fallthru
      _
    // Predicated region
    $region26: #{net_forward.1} parent=1 // pred_check
      _
    $region27: #{net_forward.1} parent=1 // pred_check_branch
      %52 = sbr.rel (0) target = $region29
    $region28: #{net_forward.1} parent=1 // pred_region
      _
    $region29: #{net_forward.1} parent=1 // pred_fallthru
      _
    // Predicated region
    $region30: #{net_forward.1} parent=1 // pred_check
      _
    $region31: #{net_forward.1} parent=1 // pred_check_branch
      %54 = sbr.rel (0) target = $region33
    $region32: #{net_forward.1} parent=1 // pred_region
      _
    $region33: #{net_forward.1} parent=1 // pred_fallthru
      _
    // Predicated region
    $region34: #{net_forward.1} parent=1 // pred_check
      _
    $region35: #{net_forward.1} parent=1 // pred_check_branch
      %56 = sbr.rel (0) target = $region37
    $region36: #{net_forward.1} parent=1 // pred_region
      _
    $region37: #{net_forward.1} parent=1 // pred_fallthru
      _
    // Predicated region
    $region38: #{net_forward.1} parent=1 // pred_check
      _
    $region39: #{net_forward.1} parent=1 // pred_check_branch
      %58 = sbr.rel (0) target = $region41
    $region40: #{net_forward.1} parent=1 // pred_region
      _
    $region41: #{net_forward.1} parent=1 // pred_fallthru
      _
    // Predicated region
    $region42: #{net_forward.1} parent=1 // pred_check
      _
    $region43: #{net_forward.1} parent=1 // pred_check_branch
      %60 = sbr.rel (0) target = $region45
    $region44: #{net_forward.1} parent=1 // pred_region
      _
    $region45: #{net_forward.1} parent=1 // pred_fallthru
      _
    // Predicated region
    $region46: #{net_forward.1} parent=1 // pred_check
      _
    $region47: #{net_forward.1} parent=1 // pred_check_branch
      %62 = sbr.rel (0) target = $region49
    $region48: #{net_forward.1} parent=1 // pred_region
      %63 = dma.done [#allocation3], 8192
    $region49: #{net_forward.1} parent=1 // pred_fallthru
      _
    // Predicated region
    $region50: #{net_forward.1} parent=1 // pred_check
      _
    $region51: #{net_forward.1} parent=1 // pred_check_branch
      %65 = sbr.rel (0) target = $region53
    $region52: #{net_forward.1} parent=1 // pred_region
      %66 = dma.done [#allocation6], 2048
    $region53: #{net_forward.1} parent=1 // pred_fallthru
      _
    %v68 = vld [vmem:[%s0] sm:$0xff]
    %v69 = vpack.c.bf16 %v68, %v68
    %v70 = vld [vmem:[%s1] sm:$0xff]
    %v71 = vld [vmem:[%s1 + $0x8] sm:$0xff]
    %v72 = vld [vmem:[%s2] sm:$0xf]
    %v74 = vlaneseq
    %v75 = vshrl.u32 %v74, 7
    %v76 = vsub.s32 0, %v75
    %v77 = vrot.slane %v72, %v76
    %v78 = vlaneseq
    %v79 = vshrl.u32 %v78, 7
    %v80 = vsub.s32 1, %v79
    %v81 = vrot.slane %v72, %v80
    %v82 = vlaneseq
    %v83 = vshrl.u32 %v82, 7
    %v84 = vsub.s32 2, %v83
    %v85 = vrot.slane %v72, %v84
    %v86 = vlaneseq
    %v87 = vshrl.u32 %v86, 7
    %v88 = vsub.s32 3, %v87
    %v89 = vrot.slane %v72, %v88
    %v96 = vunpack.c.l.b16 %v70
    %v97 = vunpack.c.h.b16 %v70
    %v98 = vunpack.c.l.b16 %v71
    %v99 = vunpack.c.h.b16 %v71
    %v100 = vpack.c.b16 %v96, %v96
    %v101 = vpack.c.b16 %v97, %v97
    %v102 = vpack.c.b16 %v98, %v98
    %v103 = vpack.c.b16 %v99, %v99
    %vm104 = vcmask 64512
    %v106 = vsel %vm104, %v69, 0
    %vm108 = vcmask 1043456
    %v110 = vsel %vm108, %v100, 0
    %v113 = vsel %vm108, %v101, 0
    %v116 = vsel %vm108, %v102, 0
    %v119 = vsel %vm108, %v103, 0
    %121 = vmatprep.subr.bf16.mxu0 %v113
    %122 = vmatpush1.bf16.msra.mxu0 %v110
    %123 = vmatprep.subr.bf16.mxu0 0
    %124 = vmatpush1.bf16.msra.mxu0 0
    %125 = vmatprep.subr.bf16.mxu0 0
    %126 = vmatpush1.bf16.msra.mxu0 0
    %127 = vmatprep.subr.bf16.mxu0 0
    %128 = vmatpush1.bf16.msra.mxu0 0
    %129 = vmatprep.subr.bf16.mxu0 0
    %130 = vmatpush1.bf16.msra.mxu0 0
    %131 = vmatprep.subr.bf16.mxu0 0
    %132 = vmatpush1.bf16.msra.mxu0 0
    %133 = vmatprep.subr.bf16.mxu0 0
    %134 = vmatpush1.bf16.msra.mxu0 0
    %135 = vmatprep.subr.bf16.mxu0 0
    %136 = vmatpush1.bf16.msra.mxu0 0
    %137 = vmatprep.subr.bf16.mxu0 0
    %138 = vmatpush1.bf16.msra.mxu0 0
    %139 = vmatprep.subr.bf16.mxu0 0
    %140 = vmatpush1.bf16.msra.mxu0 0
    %141 = vmatprep.subr.bf16.mxu0 0
    %142 = vmatpush1.bf16.msra.mxu0 0
    %143 = vmatprep.subr.bf16.mxu0 0
    %144 = vmatpush1.bf16.msra.mxu0 0
    %145 = vmatprep.subr.bf16.mxu0 0
    %146 = vmatpush1.bf16.msra.mxu0 0
    %147 = vmatprep.subr.bf16.mxu0 0
    %148 = vmatpush1.bf16.msra.mxu0 0
    %149 = vmatprep.subr.bf16.mxu0 0
    %150 = vmatpush1.bf16.msra.mxu0 0
    %151 = vmatprep.subr.bf16.mxu0 0
    %152 = vmatpush1.bf16.msra.mxu0 0
    %153 = vmatprep.mubr.bf16.mxu0 0
    %154 = vmatmul.mubr.bf16.gmra.mrb[0].mxu0 %v106
    %v155 = vpop.f32.mrb[0].mxu0
    %v156 = vadd.f32 %v77, %v155
    %v157 = vpop.f32.mrb[0].mxu0
    %v158 = vadd.f32 %v81, %v157
    %v159 = vpop.f32.mrb[0].mxu0
    %v160 = vpop.f32.mrb[0].mxu0
    %161 = vdwg.mxu0
    %162 = vmatprep.subr.bf16.mxu0 %v119
    %163 = vmatpush1.bf16.msra.mxu0 %v116
    %164 = vmatprep.subr.bf16.mxu0 0
    %165 = vmatpush1.bf16.msra.mxu0 0
    %166 = vmatprep.subr.bf16.mxu0 0
    %167 = vmatpush1.bf16.msra.mxu0 0
    %168 = vmatprep.subr.bf16.mxu0 0
    %169 = vmatpush1.bf16.msra.mxu0 0
    %170 = vmatprep.subr.bf16.mxu0 0
    %171 = vmatpush1.bf16.msra.mxu0 0
    %172 = vmatprep.subr.bf16.mxu0 0
    %173 = vmatpush1.bf16.msra.mxu0 0
    %174 = vmatprep.subr.bf16.mxu0 0
    %175 = vmatpush1.bf16.msra.mxu0 0
    %176 = vmatprep.subr.bf16.mxu0 0
    %177 = vmatpush1.bf16.msra.mxu0 0
    %178 = vmatprep.subr.bf16.mxu0 0
    %179 = vmatpush1.bf16.msra.mxu0 0
    %180 = vmatprep.subr.bf16.mxu0 0
    %181 = vmatpush1.bf16.msra.mxu0 0
    %182 = vmatprep.subr.bf16.mxu0 0
    %183 = vmatpush1.bf16.msra.mxu0 0
    %184 = vmatprep.subr.bf16.mxu0 0
    %185 = vmatpush1.bf16.msra.mxu0 0
    %186 = vmatprep.subr.bf16.mxu0 0
    %187 = vmatpush1.bf16.msra.mxu0 0
    %188 = vmatprep.subr.bf16.mxu0 0
    %189 = vmatpush1.bf16.msra.mxu0 0
    %190 = vmatprep.subr.bf16.mxu0 0
    %191 = vmatpush1.bf16.msra.mxu0 0
    %192 = vmatprep.subr.bf16.mxu0 0
    %193 = vmatpush1.bf16.msra.mxu0 0
    %194 = vmatprep.mubr.bf16.mxu0 0
    %195 = vmatmul.mubr.bf16.gmra.mrb[0].mxu0 %v106
    %v196 = vpop.f32.mrb[0].mxu0
    %v197 = vadd.f32 %v85, %v196
    %v198 = vpop.f32.mrb[0].mxu0
    %v199 = vadd.f32 %v89, %v198
    %v200 = vpop.f32.mrb[0].mxu0
    %v201 = vpop.f32.mrb[0].mxu0
    %202 = vdwg.mxu0
    %v203 = vmax.f32 %v156, 0.0
    %v204 = vmax.f32 %v158, 0.0
    %v205 = vmax.f32 %v197, 0.0
    %v206 = vmax.f32 %v199, 0.0
    %v207 = vpack.c.bf16 %v203, %v203
    %v208 = vpack.c.bf16 %v204, %v204
    %v209 = vpack.c.bf16 %v205, %v205
    %v210 = vpack.c.bf16 %v206, %v206
    %v211 = vld [vmem:[#allocation2] sm:$0xff]
    %v212 = vld [vmem:[#allocation2 + $0x8] sm:$0xff]
    %v213 = vld [vmem:[#allocation2 + $0x10] sm:$0xff]
    %v214 = vld [vmem:[#allocation2 + $0x18] sm:$0xff]
    %v215 = vld [vmem:[#allocation2 + $0x20] sm:$0xff]
    %v216 = vld [vmem:[#allocation2 + $0x28] sm:$0xff]
    %v217 = vld [vmem:[#allocation2 + $0x30] sm:$0xff]
    %v218 = vld [vmem:[#allocation2 + $0x38] sm:$0xff]
    %v219 = vld [vmem:[#allocation2 + $0x40] sm:$0xff]
    %v220 = vld [vmem:[#allocation2 + $0x48] sm:$0xff]
    %v221 = vld [vmem:[#allocation2 + $0x50] sm:$0xff]
    %v222 = vld [vmem:[#allocation2 + $0x58] sm:$0xff]
    %v223 = vld [vmem:[#allocation2 + $0x60] sm:$0xff]
    %v224 = vld [vmem:[#allocation2 + $0x68] sm:$0xff]
    %v225 = vld [vmem:[#allocation2 + $0x70] sm:$0xff]
    %v226 = vld [vmem:[#allocation2 + $0x78] sm:$0xff]
    %v227 = vld [vmem:[#allocation2 + $0x80] sm:$0xff]
    %v228 = vld [vmem:[#allocation2 + $0x88] sm:$0xff]
    %v229 = vld [vmem:[#allocation2 + $0x90] sm:$0xff]
    %v230 = vld [vmem:[#allocation2 + $0x98] sm:$0xff]
    %v231 = vld [vmem:[#allocation2 + $0xa0] sm:$0xff]
    %v232 = vld [vmem:[#allocation2 + $0xa8] sm:$0xff]
    %v233 = vld [vmem:[#allocation2 + $0xb0] sm:$0xff]
    %v234 = vld [vmem:[#allocation2 + $0xb8] sm:$0xff]
    %v235 = vld [vmem:[#allocation2 + $0xc0] sm:$0xff]
    %v236 = vld [vmem:[#allocation2 + $0xc8] sm:$0xff]
    %v237 = vld [vmem:[#allocation2 + $0xd0] sm:$0xff]
    %v238 = vld [vmem:[#allocation2 + $0xd8] sm:$0xff]
    %v239 = vld [vmem:[#allocation2 + $0xe0] sm:$0xff]
    %v240 = vld [vmem:[#allocation2 + $0xe8] sm:$0xff]
    %v241 = vld [vmem:[#allocation2 + $0xf0] sm:$0xff]
    %v242 = vld [vmem:[#allocation2 + $0xf8] sm:$0xff]
    %v243 = vld [vmem:[#allocation2 + $0x100] sm:$0xff]
    %v244 = vld [vmem:[#allocation2 + $0x108] sm:$0xff]
    %v245 = vld [vmem:[#allocation2 + $0x110] sm:$0xff]
    %v246 = vld [vmem:[#allocation2 + $0x118] sm:$0xff]
    %v247 = vld [vmem:[#allocation2 + $0x120] sm:$0xff]
    %v248 = vld [vmem:[#allocation2 + $0x128] sm:$0xff]
    %v249 = vld [vmem:[#allocation2 + $0x130] sm:$0xff]
    %v250 = vld [vmem:[#allocation2 + $0x138] sm:$0xff]
    %v251 = vld [vmem:[#allocation2 + $0x140] sm:$0xff]
    %v252 = vld [vmem:[#allocation2 + $0x148] sm:$0xff]
    %v253 = vld [vmem:[#allocation2 + $0x150] sm:$0xff]
    %v254 = vld [vmem:[#allocation2 + $0x158] sm:$0xff]
    %v255 = vld [vmem:[#allocation2 + $0x160] sm:$0xff]
    %v256 = vld [vmem:[#allocation2 + $0x168] sm:$0xff]
    %v257 = vld [vmem:[#allocation2 + $0x170] sm:$0xff]
    %v258 = vld [vmem:[#allocation2 + $0x178] sm:$0xff]
    %v259 = vld [vmem:[#allocation2 + $0x180] sm:$0xff]
    %v260 = vld [vmem:[#allocation2 + $0x188] sm:$0xff]
    %v261 = vld [vmem:[#allocation2 + $0x190] sm:$0xff]
    %v262 = vld [vmem:[#allocation2 + $0x198] sm:$0xff]
    %v263 = vld [vmem:[#allocation2 + $0x1a0] sm:$0xff]
    %v264 = vld [vmem:[#allocation2 + $0x1a8] sm:$0xff]
    %v265 = vld [vmem:[#allocation2 + $0x1b0] sm:$0xff]
    %v266 = vld [vmem:[#allocation2 + $0x1b8] sm:$0xff]
    %v267 = vld [vmem:[#allocation2 + $0x1c0] sm:$0xff]
    %v268 = vld [vmem:[#allocation2 + $0x1c8] sm:$0xff]
    %v269 = vld [vmem:[#allocation2 + $0x1d0] sm:$0xff]
    %v270 = vld [vmem:[#allocation2 + $0x1d8] sm:$0xff]
    %v271 = vld [vmem:[#allocation2 + $0x1e0] sm:$0xff]
    %v272 = vld [vmem:[#allocation2 + $0x1e8] sm:$0xff]
    %v273 = vld [vmem:[#allocation2 + $0x1f0] sm:$0xff]
    %v274 = vld [vmem:[#allocation2 + $0x1f8] sm:$0xff]
    %v275 = vld [vmem:[%s4] sm:$0x3]
    %v277 = vlaneseq
    %v278 = vshrl.u32 %v277, 7
    %v279 = vsub.s32 0, %v278
    %v280 = vrot.slane %v275, %v279
    %v281 = vlaneseq
    %v282 = vshrl.u32 %v281, 7
    %v283 = vsub.s32 1, %v282
    %v284 = vrot.slane %v275, %v283
    %v351 = vunpack.c.l.b16 %v211
    %v352 = vunpack.c.h.b16 %v211
    %v353 = vunpack.c.l.b16 %v212
    %v354 = vunpack.c.h.b16 %v212
    %v355 = vunpack.c.l.b16 %v213
    %v356 = vunpack.c.h.b16 %v213
    %v357 = vunpack.c.l.b16 %v214
    %v358 = vunpack.c.h.b16 %v214
    %v359 = vunpack.c.l.b16 %v215
    %v360 = vunpack.c.h.b16 %v215
    %v361 = vunpack.c.l.b16 %v216
    %v362 = vunpack.c.h.b16 %v216
    %v363 = vunpack.c.l.b16 %v217
    %v364 = vunpack.c.h.b16 %v217
    %v365 = vunpack.c.l.b16 %v218
    %v366 = vunpack.c.h.b16 %v218
    %v367 = vunpack.c.l.b16 %v219
    %v368 = vunpack.c.h.b16 %v219
    %v369 = vunpack.c.l.b16 %v220
    %v370 = vunpack.c.h.b16 %v220
    %v371 = vunpack.c.l.b16 %v221
    %v372 = vunpack.c.h.b16 %v221
    %v373 = vunpack.c.l.b16 %v222
    %v374 = vunpack.c.h.b16 %v222
    %v375 = vunpack.c.l.b16 %v223
    %v376 = vunpack.c.h.b16 %v223
    %v377 = vunpack.c.l.b16 %v224
    %v378 = vunpack.c.h.b16 %v224
    %v379 = vunpack.c.l.b16 %v225
    %v380 = vunpack.c.h.b16 %v225
    %v381 = vunpack.c.l.b16 %v226
    %v382 = vunpack.c.h.b16 %v226
    %v383 = vunpack.c.l.b16 %v227
    %v384 = vunpack.c.h.b16 %v227
    %v385 = vunpack.c.l.b16 %v228
    %v386 = vunpack.c.h.b16 %v228
    %v387 = vunpack.c.l.b16 %v229
    %v388 = vunpack.c.h.b16 %v229
    %v389 = vunpack.c.l.b16 %v230
    %v390 = vunpack.c.h.b16 %v230
    %v391 = vunpack.c.l.b16 %v231
    %v392 = vunpack.c.h.b16 %v231
    %v393 = vunpack.c.l.b16 %v232
    %v394 = vunpack.c.h.b16 %v232
    %v395 = vunpack.c.l.b16 %v233
    %v396 = vunpack.c.h.b16 %v233
    %v397 = vunpack.c.l.b16 %v234
    %v398 = vunpack.c.h.b16 %v234
    %v399 = vunpack.c.l.b16 %v235
    %v400 = vunpack.c.h.b16 %v235
    %v401 = vunpack.c.l.b16 %v236
    %v402 = vunpack.c.h.b16 %v236
    %v403 = vunpack.c.l.b16 %v237
    %v404 = vunpack.c.h.b16 %v237
    %v405 = vunpack.c.l.b16 %v238
    %v406 = vunpack.c.h.b16 %v238
    %v407 = vunpack.c.l.b16 %v239
    %v408 = vunpack.c.h.b16 %v239
    %v409 = vunpack.c.l.b16 %v240
    %v410 = vunpack.c.h.b16 %v240
    %v411 = vunpack.c.l.b16 %v241
    %v412 = vunpack.c.h.b16 %v241
    %v413 = vunpack.c.l.b16 %v242
    %v414 = vunpack.c.h.b16 %v242
    %v415 = vunpack.c.l.b16 %v243
    %v416 = vunpack.c.h.b16 %v243
    %v417 = vunpack.c.l.b16 %v244
    %v418 = vunpack.c.h.b16 %v244
    %v419 = vunpack.c.l.b16 %v245
    %v420 = vunpack.c.h.b16 %v245
    %v421 = vunpack.c.l.b16 %v246
    %v422 = vunpack.c.h.b16 %v246
    %v423 = vunpack.c.l.b16 %v247
    %v424 = vunpack.c.h.b16 %v247
    %v425 = vunpack.c.l.b16 %v248
    %v426 = vunpack.c.h.b16 %v248
    %v427 = vunpack.c.l.b16 %v249
    %v428 = vunpack.c.h.b16 %v249
    %v429 = vunpack.c.l.b16 %v250
    %v430 = vunpack.c.h.b16 %v250
    %v431 = vunpack.c.l.b16 %v251
    %v432 = vunpack.c.h.b16 %v251
    %v433 = vunpack.c.l.b16 %v252
    %v434 = vunpack.c.h.b16 %v252
    %v435 = vunpack.c.l.b16 %v253
    %v436 = vunpack.c.h.b16 %v253
    %v437 = vunpack.c.l.b16 %v254
    %v438 = vunpack.c.h.b16 %v254
    %v439 = vunpack.c.l.b16 %v255
    %v440 = vunpack.c.h.b16 %v255
    %v441 = vunpack.c.l.b16 %v256
    %v442 = vunpack.c.h.b16 %v256
    %v443 = vunpack.c.l.b16 %v257
    %v444 = vunpack.c.h.b16 %v257
    %v445 = vunpack.c.l.b16 %v258
    %v446 = vunpack.c.h.b16 %v258
    %v447 = vunpack.c.l.b16 %v259
    %v448 = vunpack.c.h.b16 %v259
    %v449 = vunpack.c.l.b16 %v260
    %v450 = vunpack.c.h.b16 %v260
    %v451 = vunpack.c.l.b16 %v261
    %v452 = vunpack.c.h.b16 %v261
    %v453 = vunpack.c.l.b16 %v262
    %v454 = vunpack.c.h.b16 %v262
    %v455 = vunpack.c.l.b16 %v263
    %v456 = vunpack.c.h.b16 %v263
    %v457 = vunpack.c.l.b16 %v264
    %v458 = vunpack.c.h.b16 %v264
    %v459 = vunpack.c.l.b16 %v265
    %v460 = vunpack.c.h.b16 %v265
    %v461 = vunpack.c.l.b16 %v266
    %v462 = vunpack.c.h.b16 %v266
    %v463 = vunpack.c.l.b16 %v267
    %v464 = vunpack.c.h.b16 %v267
    %v465 = vunpack.c.l.b16 %v268
    %v466 = vunpack.c.h.b16 %v268
    %v467 = vunpack.c.l.b16 %v269
    %v468 = vunpack.c.h.b16 %v269
    %v469 = vunpack.c.l.b16 %v270
    %v470 = vunpack.c.h.b16 %v270
    %v471 = vunpack.c.l.b16 %v271
    %v472 = vunpack.c.h.b16 %v271
    %v473 = vunpack.c.l.b16 %v272
    %v474 = vunpack.c.h.b16 %v272
    %v475 = vunpack.c.l.b16 %v273
    %v476 = vunpack.c.h.b16 %v273
    %v477 = vunpack.c.l.b16 %v274
    %v478 = vunpack.c.h.b16 %v274
    %v479 = vpack.c.b16 %v353, %v351
    %v480 = vpack.c.b16 %v354, %v352
    %v481 = vpack.c.b16 %v357, %v355
    %v482 = vpack.c.b16 %v358, %v356
    %v483 = vpack.c.b16 %v361, %v359
    %v484 = vpack.c.b16 %v362, %v360
    %v485 = vpack.c.b16 %v365, %v363
    %v486 = vpack.c.b16 %v366, %v364
    %v487 = vpack.c.b16 %v369, %v367
    %v488 = vpack.c.b16 %v370, %v368
    %v489 = vpack.c.b16 %v373, %v371
    %v490 = vpack.c.b16 %v374, %v372
    %v491 = vpack.c.b16 %v377, %v375
    %v492 = vpack.c.b16 %v378, %v376
    %v493 = vpack.c.b16 %v381, %v379
    %v494 = vpack.c.b16 %v382, %v380
    %v495 = vpack.c.b16 %v385, %v383
    %v496 = vpack.c.b16 %v386, %v384
    %v497 = vpack.c.b16 %v389, %v387
    %v498 = vpack.c.b16 %v390, %v388
    %v499 = vpack.c.b16 %v393, %v391
    %v500 = vpack.c.b16 %v394, %v392
    %v501 = vpack.c.b16 %v397, %v395
    %v502 = vpack.c.b16 %v398, %v396
    %v503 = vpack.c.b16 %v401, %v399
    %v504 = vpack.c.b16 %v402, %v400
    %v505 = vpack.c.b16 %v405, %v403
    %v506 = vpack.c.b16 %v406, %v404
    %v507 = vpack.c.b16 %v409, %v407
    %v508 = vpack.c.b16 %v410, %v408
    %v509 = vpack.c.b16 %v413, %v411
    %v510 = vpack.c.b16 %v414, %v412
    %v511 = vpack.c.b16 %v417, %v415
    %v512 = vpack.c.b16 %v418, %v416
    %v513 = vpack.c.b16 %v421, %v419
    %v514 = vpack.c.b16 %v422, %v420
    %v515 = vpack.c.b16 %v425, %v423
    %v516 = vpack.c.b16 %v426, %v424
    %v517 = vpack.c.b16 %v429, %v427
    %v518 = vpack.c.b16 %v430, %v428
    %v519 = vpack.c.b16 %v433, %v431
    %v520 = vpack.c.b16 %v434, %v432
    %v521 = vpack.c.b16 %v437, %v435
    %v522 = vpack.c.b16 %v438, %v436
    %v523 = vpack.c.b16 %v441, %v439
    %v524 = vpack.c.b16 %v442, %v440
    %v525 = vpack.c.b16 %v445, %v443
    %v526 = vpack.c.b16 %v446, %v444
    %v527 = vpack.c.b16 %v449, %v447
    %v528 = vpack.c.b16 %v450, %v448
    %v529 = vpack.c.b16 %v453, %v451
    %v530 = vpack.c.b16 %v454, %v452
    %v531 = vpack.c.b16 %v457, %v455
    %v532 = vpack.c.b16 %v458, %v456
    %v533 = vpack.c.b16 %v461, %v459
    %v534 = vpack.c.b16 %v462, %v460
    %v535 = vpack.c.b16 %v465, %v463
    %v536 = vpack.c.b16 %v466, %v464
    %v537 = vpack.c.b16 %v469, %v467
    %v538 = vpack.c.b16 %v470, %v468
    %v539 = vpack.c.b16 %v473, %v471
    %v540 = vpack.c.b16 %v474, %v472
    %v541 = vpack.c.b16 %v477, %v475
    %v542 = vpack.c.b16 %v478, %v476
    %607 = vmatprep.subr.bf16.mxu0 %v480
    %608 = vmatpush1.bf16.msra.mxu0 %v479
    %609 = vmatprep.subr.bf16.mxu0 %v482
    %610 = vmatpush1.bf16.msra.mxu0 %v481
    %611 = vmatprep.subr.bf16.mxu0 %v484
    %612 = vmatpush1.bf16.msra.mxu0 %v483
    %613 = vmatprep.subr.bf16.mxu0 %v486
    %614 = vmatpush1.bf16.msra.mxu0 %v485
    %615 = vmatprep.subr.bf16.mxu0 %v488
    %616 = vmatpush1.bf16.msra.mxu0 %v487
    %617 = vmatprep.subr.bf16.mxu0 %v490
    %618 = vmatpush1.bf16.msra.mxu0 %v489
    %619 = vmatprep.subr.bf16.mxu0 %v492
    %620 = vmatpush1.bf16.msra.mxu0 %v491
    %621 = vmatprep.subr.bf16.mxu0 %v494
    %622 = vmatpush1.bf16.msra.mxu0 %v493
    %623 = vmatprep.subr.bf16.mxu0 %v496
    %624 = vmatpush1.bf16.msra.mxu0 %v495
    %625 = vmatprep.subr.bf16.mxu0 %v498
    %626 = vmatpush1.bf16.msra.mxu0 %v497
    %627 = vmatprep.subr.bf16.mxu0 %v500
    %628 = vmatpush1.bf16.msra.mxu0 %v499
    %629 = vmatprep.subr.bf16.mxu0 %v502
    %630 = vmatpush1.bf16.msra.mxu0 %v501
    %631 = vmatprep.subr.bf16.mxu0 %v504
    %632 = vmatpush1.bf16.msra.mxu0 %v503
    %633 = vmatprep.subr.bf16.mxu0 %v506
    %634 = vmatpush1.bf16.msra.mxu0 %v505
    %635 = vmatprep.subr.bf16.mxu0 %v508
    %636 = vmatpush1.bf16.msra.mxu0 %v507
    %637 = vmatprep.subr.bf16.mxu0 %v510
    %638 = vmatpush1.bf16.msra.mxu0 %v509
    %639 = vmatprep.mubr.bf16.mxu0 %v208
    %640 = vmatmul.mubr.bf16.gmra.mrb[0].mxu0 %v207
    %v641 = vpop.f32.mrb[0].mxu0
    %v642 = vadd.f32 %v280, %v641
    %v643 = vpop.f32.mrb[0].mxu0
    %v644 = vadd.f32 %v284, %v643
    %v645 = vpop.f32.mrb[0].mxu0
    %v646 = vpop.f32.mrb[0].mxu0
    %647 = vdwg.mxu0
    %648 = vmatprep.subr.bf16.mxu0 %v512
    %649 = vmatpush1.bf16.msra.mxu0 %v511
    %650 = vmatprep.subr.bf16.mxu0 %v514
    %651 = vmatpush1.bf16.msra.mxu0 %v513
    %652 = vmatprep.subr.bf16.mxu0 %v516
    %653 = vmatpush1.bf16.msra.mxu0 %v515
    %654 = vmatprep.subr.bf16.mxu0 %v518
    %655 = vmatpush1.bf16.msra.mxu0 %v517
    %656 = vmatprep.subr.bf16.mxu0 %v520
    %657 = vmatpush1.bf16.msra.mxu0 %v519
    %658 = vmatprep.subr.bf16.mxu0 %v522
    %659 = vmatpush1.bf16.msra.mxu0 %v521
    %660 = vmatprep.subr.bf16.mxu0 %v524
    %661 = vmatpush1.bf16.msra.mxu0 %v523
    %662 = vmatprep.subr.bf16.mxu0 %v526
    %663 = vmatpush1.bf16.msra.mxu0 %v525
    %664 = vmatprep.subr.bf16.mxu0 %v528
    %665 = vmatpush1.bf16.msra.mxu0 %v527
    %666 = vmatprep.subr.bf16.mxu0 %v530
    %667 = vmatpush1.bf16.msra.mxu0 %v529
    %668 = vmatprep.subr.bf16.mxu0 %v532
    %669 = vmatpush1.bf16.msra.mxu0 %v531
    %670 = vmatprep.subr.bf16.mxu0 %v534
    %671 = vmatpush1.bf16.msra.mxu0 %v533
    %672 = vmatprep.subr.bf16.mxu0 %v536
    %673 = vmatpush1.bf16.msra.mxu0 %v535
    %674 = vmatprep.subr.bf16.mxu0 %v538
    %675 = vmatpush1.bf16.msra.mxu0 %v537
    %676 = vmatprep.subr.bf16.mxu0 %v540
    %677 = vmatpush1.bf16.msra.mxu0 %v539
    %678 = vmatprep.subr.bf16.mxu0 %v542
    %679 = vmatpush1.bf16.msra.mxu0 %v541
    %680 = vmatprep.mubr.bf16.mxu0 %v210
    %681 = vmatmul.mubr.bf16.gmra.mrb[0].mxu0 %v209
    %v682 = vpop.f32.mrb[0].mxu0
    %v683 = vadd.f32 %v642, %v682
    %v684 = vpop.f32.mrb[0].mxu0
    %v685 = vadd.f32 %v644, %v684
    %v686 = vpop.f32.mrb[0].mxu0
    %v687 = vpop.f32.mrb[0].mxu0
    %688 = vdwg.mxu0
    %v689 = vmax.f32 %v683, 0.0
    %v690 = vmax.f32 %v685, 0.0
    %v691 = vpack.c.bf16 %v689, %v689
    %v692 = vpack.c.bf16 %v690, %v690
    %v693 = vld [vmem:[#allocation5] sm:$0xf]
    %v694 = vld [vmem:[#allocation5 + $0x4] sm:$0xf]
    %v695 = vld [vmem:[#allocation5 + $0x8] sm:$0xf]
    %v696 = vld [vmem:[#allocation5 + $0xc] sm:$0xf]
    %v697 = vld [vmem:[#allocation5 + $0x10] sm:$0xf]
    %v698 = vld [vmem:[#allocation5 + $0x14] sm:$0xf]
    %v699 = vld [vmem:[#allocation5 + $0x18] sm:$0xf]
    %v700 = vld [vmem:[#allocation5 + $0x1c] sm:$0xf]
    %v701 = vld [vmem:[#allocation5 + $0x20] sm:$0xf]
    %v702 = vld [vmem:[#allocation5 + $0x24] sm:$0xf]
    %v703 = vld [vmem:[#allocation5 + $0x28] sm:$0xf]
    %v704 = vld [vmem:[#allocation5 + $0x2c] sm:$0xf]
    %v705 = vld [vmem:[#allocation5 + $0x30] sm:$0xf]
    %v706 = vld [vmem:[#allocation5 + $0x34] sm:$0xf]
    %v707 = vld [vmem:[#allocation5 + $0x38] sm:$0xf]
    %v708 = vld [vmem:[#allocation5 + $0x3c] sm:$0xf]
    %v709 = vld [vmem:[#allocation5 + $0x40] sm:$0xf]
    %v710 = vld [vmem:[#allocation5 + $0x44] sm:$0xf]
    %v711 = vld [vmem:[#allocation5 + $0x48] sm:$0xf]
    %v712 = vld [vmem:[#allocation5 + $0x4c] sm:$0xf]
    %v713 = vld [vmem:[#allocation5 + $0x50] sm:$0xf]
    %v714 = vld [vmem:[#allocation5 + $0x54] sm:$0xf]
    %v715 = vld [vmem:[#allocation5 + $0x58] sm:$0xf]
    %v716 = vld [vmem:[#allocation5 + $0x5c] sm:$0xf]
    %v717 = vld [vmem:[#allocation5 + $0x60] sm:$0xf]
    %v718 = vld [vmem:[#allocation5 + $0x64] sm:$0xf]
    %v719 = vld [vmem:[#allocation5 + $0x68] sm:$0xf]
    %v720 = vld [vmem:[#allocation5 + $0x6c] sm:$0xf]
    %v721 = vld [vmem:[#allocation5 + $0x70] sm:$0xf]
    %v722 = vld [vmem:[#allocation5 + $0x74] sm:$0xf]
    %v723 = vld [vmem:[#allocation5 + $0x78] sm:$0xf]
    %v724 = vld [vmem:[#allocation5 + $0x7c] sm:$0xf]
    %v725 = vld [vmem:[%s6] sm:$0x1]
    %v727 = vlaneseq
    %v728 = vshrl.u32 %v727, 7
    %v729 = vsub.s32 0, %v728
    %v730 = vrot.slane %v725, %v729
    %v764 = vunpack.c.l.b16 %v693
    %v765 = vunpack.c.l.b16 %v694
    %v766 = vunpack.c.l.b16 %v695
    %v767 = vunpack.c.l.b16 %v696
    %v768 = vunpack.c.l.b16 %v697
    %v769 = vunpack.c.l.b16 %v698
    %v770 = vunpack.c.l.b16 %v699
    %v771 = vunpack.c.l.b16 %v700
    %v772 = vunpack.c.l.b16 %v701
    %v773 = vunpack.c.l.b16 %v702
    %v774 = vunpack.c.l.b16 %v703
    %v775 = vunpack.c.l.b16 %v704
    %v776 = vunpack.c.l.b16 %v705
    %v777 = vunpack.c.l.b16 %v706
    %v778 = vunpack.c.l.b16 %v707
    %v779 = vunpack.c.l.b16 %v708
    %v780 = vunpack.c.l.b16 %v709
    %v781 = vunpack.c.l.b16 %v710
    %v782 = vunpack.c.l.b16 %v711
    %v783 = vunpack.c.l.b16 %v712
    %v784 = vunpack.c.l.b16 %v713
    %v785 = vunpack.c.l.b16 %v714
    %v786 = vunpack.c.l.b16 %v715
    %v787 = vunpack.c.l.b16 %v716
    %v788 = vunpack.c.l.b16 %v717
    %v789 = vunpack.c.l.b16 %v718
    %v790 = vunpack.c.l.b16 %v719
    %v791 = vunpack.c.l.b16 %v720
    %v792 = vunpack.c.l.b16 %v721
    %v793 = vunpack.c.l.b16 %v722
    %v794 = vunpack.c.l.b16 %v723
    %v795 = vunpack.c.l.b16 %v724
    %v796 = vpack.c.b16 %v765, %v764
    %v797 = vpack.c.b16 %v767, %v766
    %v798 = vpack.c.b16 %v769, %v768
    %v799 = vpack.c.b16 %v771, %v770
    %v800 = vpack.c.b16 %v773, %v772
    %v801 = vpack.c.b16 %v775, %v774
    %v802 = vpack.c.b16 %v777, %v776
    %v803 = vpack.c.b16 %v779, %v778
    %v804 = vpack.c.b16 %v781, %v780
    %v805 = vpack.c.b16 %v783, %v782
    %v806 = vpack.c.b16 %v785, %v784
    %v807 = vpack.c.b16 %v787, %v786
    %v808 = vpack.c.b16 %v789, %v788
    %v809 = vpack.c.b16 %v791, %v790
    %v810 = vpack.c.b16 %v793, %v792
    %v811 = vpack.c.b16 %v795, %v794
    %828 = vmatprep.subr.bf16.mxu0 0
    %829 = vmatpush1.bf16.msra.mxu0 %v796
    %830 = vmatprep.subr.bf16.mxu0 0
    %831 = vmatpush1.bf16.msra.mxu0 %v797
    %832 = vmatprep.subr.bf16.mxu0 0
    %833 = vmatpush1.bf16.msra.mxu0 %v798
    %834 = vmatprep.subr.bf16.mxu0 0
    %835 = vmatpush1.bf16.msra.mxu0 %v799
    %836 = vmatprep.subr.bf16.mxu0 0
    %837 = vmatpush1.bf16.msra.mxu0 %v800
    %838 = vmatprep.subr.bf16.mxu0 0
    %839 = vmatpush1.bf16.msra.mxu0 %v801
    %840 = vmatprep.subr.bf16.mxu0 0
    %841 = vmatpush1.bf16.msra.mxu0 %v802
    %842 = vmatprep.subr.bf16.mxu0 0
    %843 = vmatpush1.bf16.msra.mxu0 %v803
    %844 = vmatprep.subr.bf16.mxu0 0
    %845 = vmatpush1.bf16.msra.mxu0 %v804
    %846 = vmatprep.subr.bf16.mxu0 0
    %847 = vmatpush1.bf16.msra.mxu0 %v805
    %848 = vmatprep.subr.bf16.mxu0 0
    %849 = vmatpush1.bf16.msra.mxu0 %v806
    %850 = vmatprep.subr.bf16.mxu0 0
    %851 = vmatpush1.bf16.msra.mxu0 %v807
    %852 = vmatprep.subr.bf16.mxu0 0
    %853 = vmatpush1.bf16.msra.mxu0 %v808
    %854 = vmatprep.subr.bf16.mxu0 0
    %855 = vmatpush1.bf16.msra.mxu0 %v809
    %856 = vmatprep.subr.bf16.mxu0 0
    %857 = vmatpush1.bf16.msra.mxu0 %v810
    %858 = vmatprep.subr.bf16.mxu0 0
    %859 = vmatpush1.bf16.msra.mxu0 %v811
    %860 = vmatprep.mubr.bf16.mxu0 %v692
    %861 = vmatmul.mubr.bf16.gmra.mrb[0].mxu0 %v691
    %v862 = vpop.f32.mrb[0].mxu0
    %v863 = vadd.f32 %v730, %v862
    %v864 = vpop.f32.mrb[0].mxu0
    %v865 = vpop.f32.mrb[0].mxu0
    %v866 = vpop.f32.mrb[0].mxu0
    %867 = vdwg.mxu0
    %v868 = vmax.f32 %v863, 0.0
    %v869 = vpack.c.bf16 %v868, %v868
    %v870 = vld [vmem:[%s7] sm:$0xf]
    %v871 = vld [vmem:[%s7 + $0x4] sm:$0xf]
    %v872 = vld [vmem:[%s7 + $0x8] sm:$0xf]
    %v873 = vld [vmem:[%s7 + $0xc] sm:$0xf]
    %v874 = vld [vmem:[%s7 + $0x10] sm:$0xf]
    %v875 = vld [vmem:[%s7 + $0x14] sm:$0xf]
    %v876 = vld [vmem:[%s7 + $0x18] sm:$0xf]
    %v877 = vld [vmem:[%s7 + $0x1c] sm:$0xf]
    %v878 = vld [vmem:[%s7 + $0x20] sm:$0xf]
    %v879 = vld [vmem:[%s7 + $0x24] sm:$0xf]
    %v880 = vld [vmem:[%s7 + $0x28] sm:$0xf]
    %v881 = vld [vmem:[%s7 + $0x2c] sm:$0xf]
    %v882 = vld [vmem:[%s7 + $0x30] sm:$0xf]
    %v883 = vld [vmem:[%s7 + $0x34] sm:$0xf]
    %v884 = vld [vmem:[%s7 + $0x38] sm:$0xf]
    %v885 = vld [vmem:[%s7 + $0x3c] sm:$0xf]
    %v886 = vld [vmem:[%s8] sm:$0x1]
    %v888 = vlaneseq
    %v889 = vshrl.u32 %v888, 7
    %v890 = vsub.s32 0, %v889
    %v891 = vrot.slane %v886, %v890
    %v909 = vunpack.c.l.b16 %v870
    %v910 = vunpack.c.l.b16 %v871
    %v911 = vunpack.c.l.b16 %v872
    %v912 = vunpack.c.l.b16 %v873
    %v913 = vunpack.c.l.b16 %v874
    %v914 = vunpack.c.l.b16 %v875
    %v915 = vunpack.c.l.b16 %v876
    %v916 = vunpack.c.l.b16 %v877
    %v917 = vunpack.c.l.b16 %v878
    %v918 = vunpack.c.l.b16 %v879
    %v919 = vunpack.c.l.b16 %v880
    %v920 = vunpack.c.l.b16 %v881
    %v921 = vunpack.c.l.b16 %v882
    %v922 = vunpack.c.l.b16 %v883
    %v923 = vunpack.c.l.b16 %v884
    %v924 = vunpack.c.l.b16 %v885
    %v925 = vpack.c.b16 %v910, %v909
    %v926 = vpack.c.b16 %v912, %v911
    %v927 = vpack.c.b16 %v914, %v913
    %v928 = vpack.c.b16 %v916, %v915
    %v929 = vpack.c.b16 %v918, %v917
    %v930 = vpack.c.b16 %v920, %v919
    %v931 = vpack.c.b16 %v922, %v921
    %v932 = vpack.c.b16 %v924, %v923
    %941 = vmatprep.subr.bf16.mxu0 0
    %942 = vmatpush1.bf16.msra.mxu0 %v925
    %943 = vmatprep.subr.bf16.mxu0 0
    %944 = vmatpush1.bf16.msra.mxu0 %v926
    %945 = vmatprep.subr.bf16.mxu0 0
    %946 = vmatpush1.bf16.msra.mxu0 %v927
    %947 = vmatprep.subr.bf16.mxu0 0
    %948 = vmatpush1.bf16.msra.mxu0 %v928
    %949 = vmatprep.subr.bf16.mxu0 0
    %950 = vmatpush1.bf16.msra.mxu0 %v929
    %951 = vmatprep.subr.bf16.mxu0 0
    %952 = vmatpush1.bf16.msra.mxu0 %v930
    %953 = vmatprep.subr.bf16.mxu0 0
    %954 = vmatpush1.bf16.msra.mxu0 %v931
    %955 = vmatprep.subr.bf16.mxu0 0
    %956 = vmatpush1.bf16.msra.mxu0 %v932
    %957 = vmatprep.subr.bf16.mxu0 0
    %958 = vmatpush1.bf16.msra.mxu0 0
    %959 = vmatprep.subr.bf16.mxu0 0
    %960 = vmatpush1.bf16.msra.mxu0 0
    %961 = vmatprep.subr.bf16.mxu0 0
    %962 = vmatpush1.bf16.msra.mxu0 0
    %963 = vmatprep.subr.bf16.mxu0 0
    %964 = vmatpush1.bf16.msra.mxu0 0
    %965 = vmatprep.subr.bf16.mxu0 0
    %966 = vmatpush1.bf16.msra.mxu0 0
    %967 = vmatprep.subr.bf16.mxu0 0
    %968 = vmatpush1.bf16.msra.mxu0 0
    %969 = vmatprep.subr.bf16.mxu0 0
    %970 = vmatpush1.bf16.msra.mxu0 0
    %971 = vmatprep.subr.bf16.mxu0 0
    %972 = vmatpush1.bf16.msra.mxu0 0
    %973 = vmatprep.mubr.bf16.mxu0 0
    %974 = vmatmul.mubr.bf16.gmra.mrb[0].mxu0 %v869
    %v975 = vpop.f32.mrb[0].mxu0
    %v976 = vadd.f32 %v891, %v975
    %v977 = vpop.f32.mrb[0].mxu0
    %v978 = vpop.f32.mrb[0].mxu0
    %v979 = vpop.f32.mrb[0].mxu0
    %980 = vdwg.mxu0
    %v981 = vmax.f32 %v976, 0.0
    %v982 = vpack.c.bf16 %v981, %v981
    %v983 = vld [vmem:[%s9] sm:$0xf]
    %v984 = vld [vmem:[%s9 + $0x4] sm:$0xf]
    %v985 = vld [vmem:[%s9 + $0x8] sm:$0xf]
    %v986 = vld [vmem:[%s9 + $0xc] sm:$0xf]
    %v987 = vld [vmem:[%s9 + $0x10] sm:$0xf]
    %v988 = vld [vmem:[%s9 + $0x14] sm:$0xf]
    %v989 = vld [vmem:[%s9 + $0x18] sm:$0xf]
    %v990 = vld [vmem:[%s9 + $0x1c] sm:$0xf]
    %v991 = vld [vmem:[%s10] sm:$0x1]
    %v993 = vlaneseq
    %v994 = vshrl.u32 %v993, 7
    %v995 = vsub.s32 0, %v994
    %v996 = vrot.slane %v991, %v995
    %v1006 = vunpack.c.l.b16 %v983
    %v1007 = vunpack.c.l.b16 %v984
    %v1008 = vunpack.c.l.b16 %v985
    %v1009 = vunpack.c.l.b16 %v986
    %v1010 = vunpack.c.l.b16 %v987
    %v1011 = vunpack.c.l.b16 %v988
    %v1012 = vunpack.c.l.b16 %v989
    %v1013 = vunpack.c.l.b16 %v990
    %v1014 = vpack.c.b16 %v1007, %v1006
    %v1015 = vpack.c.b16 %v1009, %v1008
    %v1016 = vpack.c.b16 %v1011, %v1010
    %v1017 = vpack.c.b16 %v1013, %v1012
    %vm1022 = vcmask 523264
    %v1024 = vsel %vm1022, %v982, 0
    %1026 = vmatprep.subr.bf16.mxu0 0
    %1027 = vmatpush1.bf16.msra.mxu0 %v1014
    %1028 = vmatprep.subr.bf16.mxu0 0
    %1029 = vmatpush1.bf16.msra.mxu0 %v1015
    %1030 = vmatprep.subr.bf16.mxu0 0
    %1031 = vmatpush1.bf16.msra.mxu0 %v1016
    %1032 = vmatprep.subr.bf16.mxu0 0
    %1033 = vmatpush1.bf16.msra.mxu0 %v1017
    %1034 = vmatprep.subr.bf16.mxu0 0
    %1035 = vmatpush1.bf16.msra.mxu0 0
    %1036 = vmatprep.subr.bf16.mxu0 0
    %1037 = vmatpush1.bf16.msra.mxu0 0
    %1038 = vmatprep.subr.bf16.mxu0 0
    %1039 = vmatpush1.bf16.msra.mxu0 0
    %1040 = vmatprep.subr.bf16.mxu0 0
    %1041 = vmatpush1.bf16.msra.mxu0 0
    %1042 = vmatprep.subr.bf16.mxu0 0
    %1043 = vmatpush1.bf16.msra.mxu0 0
    %1044 = vmatprep.subr.bf16.mxu0 0
    %1045 = vmatpush1.bf16.msra.mxu0 0
    %1046 = vmatprep.subr.bf16.mxu0 0
    %1047 = vmatpush1.bf16.msra.mxu0 0
    %1048 = vmatprep.subr.bf16.mxu0 0
    %1049 = vmatpush1.bf16.msra.mxu0 0
    %1050 = vmatprep.subr.bf16.mxu0 0
    %1051 = vmatpush1.bf16.msra.mxu0 0
    %1052 = vmatprep.subr.bf16.mxu0 0
    %1053 = vmatpush1.bf16.msra.mxu0 0
    %1054 = vmatprep.subr.bf16.mxu0 0
    %1055 = vmatpush1.bf16.msra.mxu0 0
    %1056 = vmatprep.subr.bf16.mxu0 0
    %1057 = vmatpush1.bf16.msra.mxu0 0
    %1058 = vmatprep.mubr.bf16.mxu0 0
    %1059 = vmatmul.mubr.bf16.gmra.mrb[0].mxu0 %v1024
    %v1060 = vpop.f32.mrb[0].mxu0
    %v1061 = vadd.f32 %v996, %v1060
    %v1062 = vpop.f32.mrb[0].mxu0
    %v1063 = vpop.f32.mrb[0].mxu0
    %v1064 = vpop.f32.mrb[0].mxu0
    %1065 = vdwg.mxu0
    %1066 = vxpose.xlu0.b32.start [1/16] %v1061, 128
    %1067 = vxpose.xlu0.b32.cont [2/16] 0.0, 128
    %1068 = vxpose.xlu0.b32.cont [3/16] 0.0, 128
    %1069 = vxpose.xlu0.b32.cont [4/16] 0.0, 128
    %1070 = vxpose.xlu0.b32.cont [5/16] 0.0, 128
    %1071 = vxpose.xlu0.b32.cont [6/16] 0.0, 128
    %1072 = vxpose.xlu0.b32.cont [7/16] 0.0, 128
    %1073 = vxpose.xlu0.b32.cont [8/16] 0.0, 128
    %1074 = vxpose.xlu0.b32.cont [9/16] 0.0, 128
    %1075 = vxpose.xlu0.b32.cont [10/16] 0.0, 128
    %1076 = vxpose.xlu0.b32.cont [11/16] 0.0, 128
    %1077 = vxpose.xlu0.b32.cont [12/16] 0.0, 128
    %1078 = vxpose.xlu0.b32.cont [13/16] 0.0, 128
    %1079 = vxpose.xlu0.b32.cont [14/16] 0.0, 128
    %1080 = vxpose.xlu0.b32.cont [15/16] 0.0, 128
    %1081 = vxpose.xlu0.b32.end [16/16] 0.0, 128
    %v1082 = vpop.trf.xlu0
    %v1083 = vpop.trf.xlu0
    %v1084 = vpop.trf.xlu0
    %v1085 = vpop.trf.xlu0
    %v1086 = vpop.trf.xlu0
    %v1087 = vpop.trf.xlu0
    %v1088 = vpop.trf.xlu0
    %v1089 = vpop.trf.xlu0
    %v1090 = vpop.trf.xlu0
    %v1091 = vpop.trf.xlu0
    %v1092 = vpop.trf.xlu0
    %v1093 = vpop.trf.xlu0
    %v1094 = vpop.trf.xlu0
    %v1095 = vpop.trf.xlu0
    %v1096 = vpop.trf.xlu0
    %v1097 = vpop.trf.xlu0
    %vm1098 = vcmask 58368
    %1099 = vst.msk [vmem:[#allocation7] sm:$0x3] %vm1098, %v1082
    // Predicated region
    $region54: #{net_forward.1} parent=1 // pred_check
      _
    $region55: #{net_forward.1} parent=1 // pred_check_branch
      %1101 = sbr.rel (0) target = $region57
    $region56: #{net_forward.1} parent=1 // pred_region
      %s1103 = ssub.s32 32, 32
      %1104 = vsyncadd [#allocation4], %s1103
      %s1106 = sshll.u32 [#allocation7], 4
      %s1107 = int_to_ptr.vmem [resolvable:$true] %s1106
      %1109 = dma.vmem_to_hbm [thread:$0]  %s1107, 32, %s11, [#allocation4]
    $region57: #{net_forward.1} parent=1 // pred_fallthru
      _
    // Predicated region
    $region58: #{net_forward.1} parent=1 // pred_check
      _
    $region59: #{net_forward.1} parent=1 // pred_check_branch
      %1111 = sbr.rel (0) target = $region61
    $region60: #{net_forward.1} parent=1 // pred_region
      %1112 = dma.done [#allocation4], 32
    $region61: #{net_forward.1} parent=1 // pred_fallthru
      _
    %1113 = vsyncpa [#allocation3], 1
    %1114 = vsyncpa [#allocation6], 1
    %1115 = vsyncpa [#allocation4], 1

</llo_original>
